<compile_context>
chip_gen: v5e
topology: v5e:2x2
jax: 0.10.0
libtpu: 0.0.40
codegen_flags: <defaults>
</compile_context>

<pallas_src>
import functools

import jax
import jax.numpy as jnp
from jax import lax
from jax.experimental import pallas as pl
from jax.experimental.pallas import tpu as pltpu

EPS = 1e-5
NEG_SLOPE = 0.2
LANE = 128


def _conv1d_flat(h, w_packed, b):
    """k=3, pad=1 Conv1d in padded-flat layout as one MXU matmul.

    h:        (Cin, Np) f32 padded-flat activations (zero columns at the two
              pad slots of every batch segment and in the lane-alignment tail).
    w_packed: (Cout, 3*Cin) tap-major packed weights (matmul dtype).
    b:        (Cout, 1) f32 bias.
    returns   (Cout, Np) f32.
    """
    c, np_ = h.shape
    z = jnp.zeros((c, 1), h.dtype)
    he = jnp.concatenate([z, h, z], axis=1)                     # (Cin, Np+2)
    taps = jnp.concatenate([he[:, k:k + np_] for k in range(3)], axis=0)
    y = jnp.dot(w_packed, taps.astype(w_packed.dtype),
                preferred_element_type=jnp.float32)             # (Cout, Np)
    return y + b


def _bn_lrelu(h, mask, gamma, beta, inv_count):
    """Training-mode BatchNorm1d (batch stats, biased var, eps=1e-5) + LeakyReLU(0.2).

    h: (C, Np) f32; mask: (1, Np) f32 {0,1}; stats only over the B*L valid
    positions (inv_count = 1/(B*L)).  All math stays in f32 (VPU/EUP).
    """
    hm = h * mask
    mean = jnp.sum(hm, axis=1, keepdims=True) * inv_count
    d = (h - mean) * mask
    var = jnp.sum(d * d, axis=1, keepdims=True) * inv_count     # biased
    y = (h - mean) * lax.rsqrt(var + EPS)
    y = y * gamma + beta
    return jnp.where(y >= 0.0, y, NEG_SLOPE * y)


def contracting_block_kernel(x_ref, mask_ref, w1_ref, b1_ref, w2_ref, b2_ref,
                             gamma_ref, beta_ref, sel_ref, out_ref, *,
                             inv_count):
    x = x_ref[...]             # (Cin, Np) f32 padded-flat
    mask = mask_ref[...]       # (1, Np)   f32
    gamma = gamma_ref[...]     # (2C, 1)   f32
    beta = beta_ref[...]       # (2C, 1)   f32

    # conv1 -> BN -> LeakyReLU; re-zero pad slots so conv2 sees correct padding
    h = _conv1d_flat(x, w1_ref[...], b1_ref[...])
    h = _bn_lrelu(h, mask, gamma, beta, inv_count) * mask

    # conv2 -> BN -> LeakyReLU (same BN module => same gamma/beta)
    h = _conv1d_flat(h, w2_ref[...], b2_ref[...])
    h = _bn_lrelu(h, mask, gamma, beta, inv_count)              # (2C, Np) f32

    # MaxPool1d(k=2, s=2): max(h[n], h[n+1]), then one exact f32 selection
    # matmul keeping only n = b*(L+2) + 2m + 1 (compacts away all pad columns).
    c2, np_ = h.shape
    h_next = jnp.concatenate([h[:, 1:], jnp.zeros((c2, 1), h.dtype)], axis=1)
    pooled = jnp.maximum(h, h_next)
    out_ref[...] = jnp.dot(pooled, sel_ref[...],
                           preferred_element_type=jnp.float32
                           ).astype(out_ref.dtype)


def contracting_block(x, params, *, matmul_dtype=jnp.bfloat16):
    """x: (B, C, L) -> (B, 2C, L//2), matching ContractingBlock.forward."""
    B, Cin, L = x.shape
    assert L % 2 == 0
    C2 = 2 * Cin
    W = L + 2                          # per-batch segment width (conv pad baked in)
    Np = B * W                         # valid lane extent of padded-flat layout
    Np_pad = ((Np + LANE - 1) // LANE) * LANE   # lane-aligned extent
    Lh = L // 2
    M = B * Lh                         # lane extent of the pooled output

    # ---- layout plumbing (wrapper-side XLA, not kernel compute) ----
    xt = jnp.transpose(x, (1, 0, 2)).astype(jnp.float32)        # (Cin, B, L)
    x2d = jnp.pad(xt, ((0, 0), (0, 0), (1, 1))).reshape(Cin, Np)
    x2d = jnp.pad(x2d, ((0, 0), (0, Np_pad - Np)))              # (Cin, Np_pad)

    def pack_w(w):  # (Cout, Cin, 3) -> (Cout, 3*Cin), tap-major
        cout = w.shape[0]
        return jnp.transpose(w, (0, 2, 1)).reshape(cout, -1).astype(matmul_dtype)

    w1p = pack_w(params["w1"])
    w2p = pack_w(params["w2"])
    b1 = params["b1"][:, None].astype(jnp.float32)
    b2 = params["b2"][:, None].astype(jnp.float32)
    gamma = params["gamma"][:, None].astype(jnp.float32)
    beta = params["beta"][:, None].astype(jnp.float32)

    # validity mask over the padded-flat axis (1.0 at the B*L real positions;
    # 0.0 at per-segment pad slots AND at the lane-alignment tail)
    col = jnp.arange(Np_pad)
    pos = col % W
    mask = ((col < Np) & (pos >= 1) & (pos <= L)).astype(jnp.float32)[None, :]

    # maxpool selection matrix: column j = b*Lh + m picks flat n = b*W + 2m + 1
    j = jnp.arange(M)
    n0 = (j // Lh) * W + 2 * (j % Lh) + 1
    sel = (jnp.arange(Np_pad)[:, None] == n0[None, :]).astype(jnp.float32)

    args = (x2d, mask, w1p, b1, w2p, b2, gamma, beta, sel)

    def full_spec(shape):
        return pl.BlockSpec(shape, lambda i, _nd=len(shape): (0,) * _nd)

    flops = (2 * Np_pad * C2 * 3 * Cin       # conv1
             + 2 * Np_pad * C2 * 3 * C2      # conv2
             + 2 * Np_pad * M * C2           # pooling selection matmul
             + 14 * C2 * Np_pad)             # BN / LeakyReLU elementwise
    bytes_accessed = int(sum(int(a.size) * a.dtype.itemsize for a in args)
                         + C2 * M * 4)
    cost = pl.CostEstimate(flops=int(flops), transcendentals=2 * C2,
                           bytes_accessed=bytes_accessed)

    out2d = pl.pallas_call(
        functools.partial(contracting_block_kernel,
                          inv_count=1.0 / float(B * L)),
        out_shape=jax.ShapeDtypeStruct((C2, M), jnp.float32),
        grid=(1,),
        in_specs=[full_spec(a.shape) for a in args],
        out_specs=full_spec((C2, M)),
        compiler_params=pltpu.CompilerParams(
            dimension_semantics=("arbitrary",),
            vmem_limit_bytes=32 * 1024 * 1024),
        cost_estimate=cost,
    )(*args)

    # (2C, B*L/2) lane-dense kernel output -> (B, 2C, L/2) PyTorch layout
    out = out2d.reshape(C2, B, Lh).transpose(1, 0, 2)
    return out.astype(x.dtype)


def contracting_block_ref(x, params):
    """Pure-JAX reference mirroring the PyTorch forward (for verification)."""
    def conv(h, w, b):
        y = lax.conv_general_dilated(h, w, window_strides=(1,),
                                     padding=[(1, 1)],
                                     dimension_numbers=("NCH", "OIH", "NCH"))
        return y + b[None, :, None]

    def bn_lrelu(h):
        mean = h.mean(axis=(0, 2), keepdims=True)
        var = ((h - mean) ** 2).mean(axis=(0, 2), keepdims=True)
        y = (h - mean) / jnp.sqrt(var + EPS)
        y = y * params["gamma"][None, :, None] + params["beta"][None, :, None]
        return jnp.where(y >= 0.0, y, NEG_SLOPE * y)

    h = bn_lrelu(conv(x, params["w1"], params["b1"]))
    h = bn_lrelu(conv(h, params["w2"], params["b2"]))
    B, C, L = h.shape
    return h.reshape(B, C, L // 2, 2).max(axis=-1)


if __name__ == "__main__":
    B, Cin, L = 2, 4, 128          # input_channels=4 -> 2C=8; B*L/2 = 128 lanes
    C2 = 2 * Cin
    key = jax.random.PRNGKey(0)
    ks = jax.random.split(key, 7)

    x = jax.random.normal(ks[0], (B, Cin, L), jnp.float32)
    params = {
        # Conv1d weights in PyTorch layout (Cout, Cin, K)
        "w1": 0.1 * jax.random.normal(ks[1], (C2, Cin, 3), jnp.float32),
        "b1": 0.1 * jax.random.normal(ks[2], (C2,), jnp.float32),
        "w2": 0.1 * jax.random.normal(ks[3], (C2, C2, 3), jnp.float32),
        "b2": 0.1 * jax.random.normal(ks[4], (C2,), jnp.float32),
        # BatchNorm1d affine params (non-trivial to exercise the affine path)
        "gamma": 1.0 + 0.1 * jax.random.normal(ks[5], (C2,), jnp.float32),
        "beta": 0.1 * jax.random.normal(ks[6], (C2,), jnp.float32),
    }

    ref = jax.block_until_ready(contracting_block_ref(x, params))

    # f32-matmul path: tight check against the pure-JAX reference
    out_f32 = jax.block_until_ready(
        contracting_block(x, params, matmul_dtype=jnp.float32))
    assert out_f32.shape == (B, C2, L // 2)
    err32 = float(jnp.max(jnp.abs(out_f32 - ref)))
    assert jnp.allclose(out_f32, ref, atol=5e-4, rtol=5e-4), (
        f"f32 path max abs err {err32}")

    # bf16-MXU path (default): f32 accumulation, looser tolerance
    out_bf16 = jax.block_until_ready(contracting_block(x, params))
    err16 = float(jnp.max(jnp.abs(out_bf16 - ref)))
    assert out_bf16.shape == (B, C2, L // 2)
    assert jnp.allclose(out_bf16, ref, atol=3e-2, rtol=3e-2), (
        f"bf16 path max abs err {err16}")

    print("KERNEL_OK")
</pallas_src>

<mosaic_0001>
module attributes {stable_mosaic.version = 11 : i64} {
  func.func @contracting_block_kernel(%arg0: i32, %arg1: memref<4x384xf32, #tpu.memory_space<vmem>>, %arg2: memref<1x384xf32, #tpu.memory_space<vmem>>, %arg3: memref<8x12xf32, #tpu.memory_space<vmem>>, %arg4: memref<8x1xf32, #tpu.memory_space<vmem>>, %arg5: memref<8x24xf32, #tpu.memory_space<vmem>>, %arg6: memref<8x1xf32, #tpu.memory_space<vmem>>, %arg7: memref<8x1xf32, #tpu.memory_space<vmem>>, %arg8: memref<8x1xf32, #tpu.memory_space<vmem>>, %arg9: memref<384x128xf32, #tpu.memory_space<vmem>>, %arg10: memref<8x128xf32, #tpu.memory_space<vmem>>) attributes {dimension_semantics = [#tpu.dimension_semantics<arbitrary>], iteration_bounds = array<i64: 1>, scalar_prefetch = 0 : i64, scratch_operands = 0 : i64, tpu.core_type = #tpu.core_type<tc>, window_params = [{pipeline_mode = #tpu.pipeline_mode<synchronous>, transform_indices = @transform_0, window_bounds = array<i64: 4, 384>}, {pipeline_mode = #tpu.pipeline_mode<synchronous>, transform_indices = @transform_1, window_bounds = array<i64: 1, 384>}, {pipeline_mode = #tpu.pipeline_mode<synchronous>, transform_indices = @transform_2, window_bounds = array<i64: 8, 12>}, {pipeline_mode = #tpu.pipeline_mode<synchronous>, transform_indices = @transform_3, window_bounds = array<i64: 8, 1>}, {pipeline_mode = #tpu.pipeline_mode<synchronous>, transform_indices = @transform_4, window_bounds = array<i64: 8, 24>}, {pipeline_mode = #tpu.pipeline_mode<synchronous>, transform_indices = @transform_5, window_bounds = array<i64: 8, 1>}, {pipeline_mode = #tpu.pipeline_mode<synchronous>, transform_indices = @transform_6, window_bounds = array<i64: 8, 1>}, {pipeline_mode = #tpu.pipeline_mode<synchronous>, transform_indices = @transform_7, window_bounds = array<i64: 8, 1>}, {pipeline_mode = #tpu.pipeline_mode<synchronous>, transform_indices = @transform_8, window_bounds = array<i64: 384, 128>}, {pipeline_mode = #tpu.pipeline_mode<synchronous>, transform_indices = @transform_9, window_bounds = array<i64: 8, 128>}]} {
    %c0 = arith.constant 0 : index
    %c0_0 = arith.constant 0 : index
    %0 = vector.load %arg1[%c0, %c0_0] : memref<4x384xf32, #tpu.memory_space<vmem>>, vector<4x384xf32>
    %c0_1 = arith.constant 0 : index
    %c0_2 = arith.constant 0 : index
    %1 = vector.load %arg2[%c0_1, %c0_2] : memref<1x384xf32, #tpu.memory_space<vmem>>, vector<1x384xf32>
    %c0_3 = arith.constant 0 : index
    %c0_4 = arith.constant 0 : index
    %2 = vector.load %arg7[%c0_3, %c0_4] : memref<8x1xf32, #tpu.memory_space<vmem>>, vector<8x1xf32>
    %c0_5 = arith.constant 0 : index
    %c0_6 = arith.constant 0 : index
    %3 = vector.load %arg8[%c0_5, %c0_6] : memref<8x1xf32, #tpu.memory_space<vmem>>, vector<8x1xf32>
    %c0_7 = arith.constant 0 : index
    %c0_8 = arith.constant 0 : index
    %4 = vector.load %arg3[%c0_7, %c0_8] : memref<8x12xf32, #tpu.memory_space<vmem>>, vector<8x12xf32>
    %c0_9 = arith.constant 0 : index
    %c0_10 = arith.constant 0 : index
    %5 = vector.load %arg4[%c0_9, %c0_10] : memref<8x1xf32, #tpu.memory_space<vmem>>, vector<8x1xf32>
    %cst = arith.constant 0.000000e+00 : f32
    %6 = vector.broadcast %cst : f32 to vector<4x1xf32>
    %7 = tpu.concatenate %6, %0, %6 in 1 : vector<4x1xf32>, vector<4x384xf32>, vector<4x1xf32> -> vector<4x386xf32>
    %8 = vector.extract_strided_slice %7 {offsets = [0, 0], sizes = [4, 384], strides = [1, 1]} : vector<4x386xf32> to vector<4x384xf32>
    %9 = vector.extract_strided_slice %7 {offsets = [0, 1], sizes = [4, 384], strides = [1, 1]} : vector<4x386xf32> to vector<4x384xf32>
    %10 = vector.extract_strided_slice %7 {offsets = [0, 2], sizes = [4, 384], strides = [1, 1]} : vector<4x386xf32> to vector<4x384xf32>
    %11 = tpu.concatenate %8, %9, %10 in 0 : vector<4x384xf32>, vector<4x384xf32>, vector<4x384xf32> -> vector<12x384xf32>
    %cst_11 = arith.constant dense<0.000000e+00> : vector<8x384xf32>
    %12 = tpu.matmul %4, %11, %cst_11 {dimension_numbers = #tpu.dot_dimension_numbers<[1], [0], [0], [1], [0, 0, 1, 1], [], []>} : vector<8x12xf32>, vector<12x384xf32>, vector<8x384xf32> -> vector<8x384xf32>
    %13 = vector.broadcast %5 : vector<8x1xf32> to vector<8x384xf32>
    %14 = arith.addf %12, %13 : vector<8x384xf32>
    %15 = vector.broadcast %1 : vector<1x384xf32> to vector<8x384xf32>
    %16 = arith.mulf %14, %15 : vector<8x384xf32>
    %cst_12 = arith.constant dense<0.000000e+00> : vector<8xf32>
    %17 = vector.multi_reduction <add>, %16, %cst_12 [1] : vector<8x384xf32> to vector<8xf32>
    %18 = vector.shape_cast %17 : vector<8xf32> to vector<8x1xf32>
    %cst_13 = arith.constant 3.906250e-03 : f32
    %19 = vector.broadcast %cst_13 : f32 to vector<8x1xf32>
    %20 = arith.mulf %18, %19 : vector<8x1xf32>
    %21 = vector.broadcast %20 : vector<8x1xf32> to vector<8x384xf32>
    %22 = arith.subf %14, %21 : vector<8x384xf32>
    %23 = vector.broadcast %1 : vector<1x384xf32> to vector<8x384xf32>
    %24 = arith.mulf %22, %23 : vector<8x384xf32>
    %25 = arith.mulf %24, %24 : vector<8x384xf32>
    %cst_14 = arith.constant dense<0.000000e+00> : vector<8xf32>
    %26 = vector.multi_reduction <add>, %25, %cst_14 [1] : vector<8x384xf32> to vector<8xf32>
    %27 = vector.shape_cast %26 : vector<8xf32> to vector<8x1xf32>
    %cst_15 = arith.constant 3.906250e-03 : f32
    %28 = vector.broadcast %cst_15 : f32 to vector<8x1xf32>
    %29 = arith.mulf %27, %28 : vector<8x1xf32>
    %30 = vector.broadcast %20 : vector<8x1xf32> to vector<8x384xf32>
    %31 = arith.subf %14, %30 : vector<8x384xf32>
    %cst_16 = arith.constant 9.99999974E-6 : f32
    %32 = vector.broadcast %cst_16 : f32 to vector<8x1xf32>
    %33 = arith.addf %29, %32 : vector<8x1xf32>
    %34 = math.rsqrt %33 : vector<8x1xf32>
    %35 = vector.broadcast %34 : vector<8x1xf32> to vector<8x384xf32>
    %36 = arith.mulf %31, %35 : vector<8x384xf32>
    %37 = vector.broadcast %2 : vector<8x1xf32> to vector<8x384xf32>
    %38 = arith.mulf %36, %37 : vector<8x384xf32>
    %39 = vector.broadcast %3 : vector<8x1xf32> to vector<8x384xf32>
    %40 = arith.addf %38, %39 : vector<8x384xf32>
    %cst_17 = arith.constant 0.000000e+00 : f32
    %41 = vector.broadcast %cst_17 : f32 to vector<8x384xf32>
    %42 = arith.cmpf oge, %40, %41 : vector<8x384xf32>
    %cst_18 = arith.constant 2.000000e-01 : f32
    %43 = vector.broadcast %cst_18 : f32 to vector<8x384xf32>
    %44 = arith.mulf %43, %40 : vector<8x384xf32>
    %45 = arith.select %42, %40, %44 : vector<8x384xi1>, vector<8x384xf32>
    %46 = vector.broadcast %1 : vector<1x384xf32> to vector<8x384xf32>
    %47 = arith.mulf %45, %46 : vector<8x384xf32>
    %c0_19 = arith.constant 0 : index
    %c0_20 = arith.constant 0 : index
    %48 = vector.load %arg5[%c0_19, %c0_20] : memref<8x24xf32, #tpu.memory_space<vmem>>, vector<8x24xf32>
    %c0_21 = arith.constant 0 : index
    %c0_22 = arith.constant 0 : index
    %49 = vector.load %arg6[%c0_21, %c0_22] : memref<8x1xf32, #tpu.memory_space<vmem>>, vector<8x1xf32>
    %cst_23 = arith.constant 0.000000e+00 : f32
    %50 = vector.broadcast %cst_23 : f32 to vector<8x1xf32>
    %51 = tpu.concatenate %50, %47, %50 in 1 : vector<8x1xf32>, vector<8x384xf32>, vector<8x1xf32> -> vector<8x386xf32>
    %52 = vector.extract_strided_slice %51 {offsets = [0, 0], sizes = [8, 384], strides = [1, 1]} : vector<8x386xf32> to vector<8x384xf32>
    %53 = vector.extract_strided_slice %51 {offsets = [0, 1], sizes = [8, 384], strides = [1, 1]} : vector<8x386xf32> to vector<8x384xf32>
    %54 = vector.extract_strided_slice %51 {offsets = [0, 2], sizes = [8, 384], strides = [1, 1]} : vector<8x386xf32> to vector<8x384xf32>
    %55 = tpu.concatenate %52, %53, %54 in 0 : vector<8x384xf32>, vector<8x384xf32>, vector<8x384xf32> -> vector<24x384xf32>
    %cst_24 = arith.constant dense<0.000000e+00> : vector<8x384xf32>
    %56 = tpu.matmul %48, %55, %cst_24 {dimension_numbers = #tpu.dot_dimension_numbers<[1], [0], [0], [1], [0, 0, 1, 1], [], []>} : vector<8x24xf32>, vector<24x384xf32>, vector<8x384xf32> -> vector<8x384xf32>
    %57 = vector.broadcast %49 : vector<8x1xf32> to vector<8x384xf32>
    %58 = arith.addf %56, %57 : vector<8x384xf32>
    %59 = vector.broadcast %1 : vector<1x384xf32> to vector<8x384xf32>
    %60 = arith.mulf %58, %59 : vector<8x384xf32>
    %cst_25 = arith.constant dense<0.000000e+00> : vector<8xf32>
    %61 = vector.multi_reduction <add>, %60, %cst_25 [1] : vector<8x384xf32> to vector<8xf32>
    %62 = vector.shape_cast %61 : vector<8xf32> to vector<8x1xf32>
    %cst_26 = arith.constant 3.906250e-03 : f32
    %63 = vector.broadcast %cst_26 : f32 to vector<8x1xf32>
    %64 = arith.mulf %62, %63 : vector<8x1xf32>
    %65 = vector.broadcast %64 : vector<8x1xf32> to vector<8x384xf32>
    %66 = arith.subf %58, %65 : vector<8x384xf32>
    %67 = vector.broadcast %1 : vector<1x384xf32> to vector<8x384xf32>
    %68 = arith.mulf %66, %67 : vector<8x384xf32>
    %69 = arith.mulf %68, %68 : vector<8x384xf32>
    %cst_27 = arith.constant dense<0.000000e+00> : vector<8xf32>
    %70 = vector.multi_reduction <add>, %69, %cst_27 [1] : vector<8x384xf32> to vector<8xf32>
    %71 = vector.shape_cast %70 : vector<8xf32> to vector<8x1xf32>
    %cst_28 = arith.constant 3.906250e-03 : f32
    %72 = vector.broadcast %cst_28 : f32 to vector<8x1xf32>
    %73 = arith.mulf %71, %72 : vector<8x1xf32>
    %74 = vector.broadcast %64 : vector<8x1xf32> to vector<8x384xf32>
    %75 = arith.subf %58, %74 : vector<8x384xf32>
    %cst_29 = arith.constant 9.99999974E-6 : f32
    %76 = vector.broadcast %cst_29 : f32 to vector<8x1xf32>
    %77 = arith.addf %73, %76 : vector<8x1xf32>
    %78 = math.rsqrt %77 : vector<8x1xf32>
    %79 = vector.broadcast %78 : vector<8x1xf32> to vector<8x384xf32>
    %80 = arith.mulf %75, %79 : vector<8x384xf32>
    %81 = vector.broadcast %2 : vector<8x1xf32> to vector<8x384xf32>
    %82 = arith.mulf %80, %81 : vector<8x384xf32>
    %83 = vector.broadcast %3 : vector<8x1xf32> to vector<8x384xf32>
    %84 = arith.addf %82, %83 : vector<8x384xf32>
    %cst_30 = arith.constant 0.000000e+00 : f32
    %85 = vector.broadcast %cst_30 : f32 to vector<8x384xf32>
    %86 = arith.cmpf oge, %84, %85 : vector<8x384xf32>
    %cst_31 = arith.constant 2.000000e-01 : f32
    %87 = vector.broadcast %cst_31 : f32 to vector<8x384xf32>
    %88 = arith.mulf %87, %84 : vector<8x384xf32>
    %89 = arith.select %86, %84, %88 : vector<8x384xi1>, vector<8x384xf32>
    %90 = vector.extract_strided_slice %89 {offsets = [0, 1], sizes = [8, 383], strides = [1, 1]} : vector<8x384xf32> to vector<8x383xf32>
    %cst_32 = arith.constant 0.000000e+00 : f32
    %91 = vector.broadcast %cst_32 : f32 to vector<8x1xf32>
    %92 = tpu.concatenate %90, %91 in 1 : vector<8x383xf32>, vector<8x1xf32> -> vector<8x384xf32>
    %93 = arith.maximumf %89, %92 : vector<8x384xf32>
    %c0_33 = arith.constant 0 : index
    %c0_34 = arith.constant 0 : index
    %94 = vector.load %arg9[%c0_33, %c0_34] : memref<384x128xf32, #tpu.memory_space<vmem>>, vector<384x128xf32>
    %cst_35 = arith.constant dense<0.000000e+00> : vector<8x128xf32>
    %95 = tpu.matmul %93, %94, %cst_35 {dimension_numbers = #tpu.dot_dimension_numbers<[1], [0], [0], [1], [0, 0, 1, 1], [], []>} : vector<8x384xf32>, vector<384x128xf32>, vector<8x128xf32> -> vector<8x128xf32>
    %c0_36 = arith.constant 0 : index
    %c0_37 = arith.constant 0 : index
    %96 = vector.load %arg10[%c0_36, %c0_37] : memref<8x128xf32, #tpu.memory_space<vmem>>, vector<8x128xf32>
    tpu.vector_store %arg10[%c0_36, %c0_37], %95 {strides = array<i32>} : memref<8x128xf32, #tpu.memory_space<vmem>>, vector<8x128xf32>,
    return
  }
  func.func @transform_0(%arg0: i32) -> (i32, i32) {
    %c0_i32 = arith.constant 0 : i32
    %c0_i32_0 = arith.constant 0 : i32
    %c0_i32_1 = arith.constant 0 : i32
    return %c0_i32, %c0_i32_0 : i32, i32
  }
  func.func @transform_1(%arg0: i32) -> (i32, i32) {
    %c0_i32 = arith.constant 0 : i32
    %c0_i32_0 = arith.constant 0 : i32
    %c0_i32_1 = arith.constant 0 : i32
    return %c0_i32, %c0_i32_0 : i32, i32
  }
  func.func @transform_2(%arg0: i32) -> (i32, i32) {
    %c0_i32 = arith.constant 0 : i32
    %c0_i32_0 = arith.constant 0 : i32
    %c0_i32_1 = arith.constant 0 : i32
    return %c0_i32, %c0_i32_0 : i32, i32
  }
  func.func @transform_3(%arg0: i32) -> (i32, i32) {
    %c0_i32 = arith.constant 0 : i32
    %c0_i32_0 = arith.constant 0 : i32
    %c0_i32_1 = arith.constant 0 : i32
    return %c0_i32, %c0_i32_0 : i32, i32
  }
  func.func @transform_4(%arg0: i32) -> (i32, i32) {
    %c0_i32 = arith.constant 0 : i32
    %c0_i32_0 = arith.constant 0 : i32
    %c0_i32_1 = arith.constant 0 : i32
    return %c0_i32, %c0_i32_0 : i32, i32
  }
  func.func @transform_5(%arg0: i32) -> (i32, i32) {
    %c0_i32 = arith.constant 0 : i32
    %c0_i32_0 = arith.constant 0 : i32
    %c0_i32_1 = arith.constant 0 : i32
    return %c0_i32, %c0_i32_0 : i32, i32
  }
  func.func @transform_6(%arg0: i32) -> (i32, i32) {
    %c0_i32 = arith.constant 0 : i32
    %c0_i32_0 = arith.constant 0 : i32
    %c0_i32_1 = arith.constant 0 : i32
    return %c0_i32, %c0_i32_0 : i32, i32
  }
  func.func @transform_7(%arg0: i32) -> (i32, i32) {
    %c0_i32 = arith.constant 0 : i32
    %c0_i32_0 = arith.constant 0 : i32
    %c0_i32_1 = arith.constant 0 : i32
    return %c0_i32, %c0_i32_0 : i32, i32
  }
  func.func @transform_8(%arg0: i32) -> (i32, i32) {
    %c0_i32 = arith.constant 0 : i32
    %c0_i32_0 = arith.constant 0 : i32
    %c0_i32_1 = arith.constant 0 : i32
    return %c0_i32, %c0_i32_0 : i32, i32
  }
  func.func @transform_9(%arg0: i32) -> (i32, i32) {
    %c0_i32 = arith.constant 0 : i32
    %c0_i32_0 = arith.constant 0 : i32
    %c0_i32_1 = arith.constant 0 : i32
    return %c0_i32, %c0_i32_0 : i32, i32
  }
}

</mosaic_0001>

<llo_original>
// kernel: tpu_custom_call.1
$region0: #{tpu_custom_call.1}
  #allocation0 [shape = 'u32[]', space=smem, size = 0x4, offset = 0x4, fixed_abs, tag = 'smem constant byte address 0x4 - core index']
  #allocation1 [shape = 'u32[72,128]{1,0:T(1,128)}', space=vmem, size = 0x9000, scoped, tag = 'internal scratch']
  %s0 = inlined_call_operand.vmem [shape: f32[4,384], index: 0, kind: input, shape index: {}]
  %s1 = inlined_call_operand.vmem [shape: f32[1,384], index: 1, kind: input, shape index: {}]
  %s2 = inlined_call_operand.vmem [shape: f32[8,12], index: 2, kind: input, shape index: {}]
  %s3 = inlined_call_operand.vmem [shape: f32[8,1], index: 3, kind: input, shape index: {}]
  %s4 = inlined_call_operand.vmem [shape: f32[8,24], index: 4, kind: input, shape index: {}]
  %s5 = inlined_call_operand.vmem [shape: f32[8,1], index: 5, kind: input, shape index: {}]
  %s6 = inlined_call_operand.vmem [shape: f32[8,1], index: 6, kind: input, shape index: {}]
  %s7 = inlined_call_operand.vmem [shape: f32[8,1], index: 7, kind: input, shape index: {}]
  %s8 = inlined_call_operand.hbm [shape: f32[384,128], index: 8, kind: input, shape index: {}]
  %s9 = inlined_call_operand.hbm [shape: f32[8,128], index: 9, kind: output, shape index: {}]
  %s10 = sld [smem:[#allocation0]]
  $region50: #{tpu_custom_call.1} parent=0
    _
  %s12 = ssub.s32 1, %s10
  %s13 = scalar_select 0, %s12, %s10
  $region1: #{tpu_custom_call.1} parent=0
    #allocation2 [shape = 'u8[196608]{0}', space=vmem, size = 0x30000, scoped, tag = 'input window, operand 8, single buffered']
    #allocation3 [shape = 's32[1]{0}', space=sflag, size = 0x4, scoped, tag = 'scoped memory for tpu_custom_call.1']
    #allocation4 [shape = 's32[1]{0}', space=sflag, size = 0x4, scoped, tag = 'scoped memory for tpu_custom_call.1']
    #allocation5 [shape = 'u8[4096]{0}', space=vmem, size = 0x1000, scoped, tag = 'output window, operand 0, single buffered']
    %14 = vsyncpa [#allocation3], 0
    %15 = vsyncpa [#allocation4], 0
    // Predicated region
    $region2: #{tpu_custom_call.1} parent=1 // pred_check
      _
    $region3: #{tpu_custom_call.1} parent=1 // pred_check_branch
      %17 = sbr.rel (0) target = $region5
    $region4: #{tpu_custom_call.1} parent=1 // pred_region
      _
    $region5: #{tpu_custom_call.1} parent=1 // pred_fallthru
      _
    // Predicated region
    $region6: #{tpu_custom_call.1} parent=1 // pred_check
      _
    $region7: #{tpu_custom_call.1} parent=1 // pred_check_branch
      %19 = sbr.rel (0) target = $region9
    $region8: #{tpu_custom_call.1} parent=1 // pred_region
      _
    $region9: #{tpu_custom_call.1} parent=1 // pred_fallthru
      _
    // Predicated region
    $region10: #{tpu_custom_call.1} parent=1 // pred_check
      _
    $region11: #{tpu_custom_call.1} parent=1 // pred_check_branch
      %21 = sbr.rel (0) target = $region13
    $region12: #{tpu_custom_call.1} parent=1 // pred_region
      _
    $region13: #{tpu_custom_call.1} parent=1 // pred_fallthru
      _
    // Predicated region
    $region14: #{tpu_custom_call.1} parent=1 // pred_check
      _
    $region15: #{tpu_custom_call.1} parent=1 // pred_check_branch
      %23 = sbr.rel (0) target = $region17
    $region16: #{tpu_custom_call.1} parent=1 // pred_region
      _
    $region17: #{tpu_custom_call.1} parent=1 // pred_fallthru
      _
    // Predicated region
    $region18: #{tpu_custom_call.1} parent=1 // pred_check
      _
    $region19: #{tpu_custom_call.1} parent=1 // pred_check_branch
      %25 = sbr.rel (0) target = $region21
    $region20: #{tpu_custom_call.1} parent=1 // pred_region
      _
    $region21: #{tpu_custom_call.1} parent=1 // pred_fallthru
      _
    // Predicated region
    $region22: #{tpu_custom_call.1} parent=1 // pred_check
      _
    $region23: #{tpu_custom_call.1} parent=1 // pred_check_branch
      %27 = sbr.rel (0) target = $region25
    $region24: #{tpu_custom_call.1} parent=1 // pred_region
      _
    $region25: #{tpu_custom_call.1} parent=1 // pred_fallthru
      _
    // Predicated region
    $region26: #{tpu_custom_call.1} parent=1 // pred_check
      _
    $region27: #{tpu_custom_call.1} parent=1 // pred_check_branch
      %29 = sbr.rel (0) target = $region29
    $region28: #{tpu_custom_call.1} parent=1 // pred_region
      _
    $region29: #{tpu_custom_call.1} parent=1 // pred_fallthru
      _
    // Predicated region
    $region30: #{tpu_custom_call.1} parent=1 // pred_check
      _
    $region31: #{tpu_custom_call.1} parent=1 // pred_check_branch
      %31 = sbr.rel (0) target = $region33
    $region32: #{tpu_custom_call.1} parent=1 // pred_region
      _
    $region33: #{tpu_custom_call.1} parent=1 // pred_fallthru
      _
    // Predicated region
    $region34: #{tpu_custom_call.1} parent=1 // pred_check
      _
    $region35: #{tpu_custom_call.1} parent=1 // pred_check_branch
      %33 = sbr.rel (0) target = $region37
    $region36: #{tpu_custom_call.1} parent=1 // pred_region
      %35 = vsyncadd [#allocation3], 0
      %s36 = sshll.u32 %s8, 4
      %s37 = int_to_ptr.hbm [resolvable:$true] %s36
      %s38 = sshll.u32 [#allocation2], 4
      %s39 = int_to_ptr.vmem [resolvable:$true] %s38
      %44 = dma.hbm_to_vmem [thread:$0]  %s37, 6144, %s39, [#allocation3], 128, 128, 8
    $region37: #{tpu_custom_call.1} parent=1 // pred_fallthru
      _
    // Predicated region
    $region38: #{tpu_custom_call.1} parent=1 // pred_check
      _
    $region39: #{tpu_custom_call.1} parent=1 // pred_check_branch
      %46 = sbr.rel (0) target = $region41
    $region40: #{tpu_custom_call.1} parent=1 // pred_region
      %48 = dma.done [#allocation3], 6144
    $region41: #{tpu_custom_call.1} parent=1 // pred_fallthru
      _
    %v49 = vld [vmem:[%s0] sm:$0xff]
    %v50 = vld [vmem:[%s0 + $0x8] sm:$0xf]
    %v51 = vld [vmem:[%s1] sm:$0x7]
    %v52 = vld [vmem:[%s6] sm:$0xff]
    %v53 = vld [vmem:[%s7] sm:$0xff]
    %v54 = vld [vmem:[%s2] sm:$0xff]
    %v55 = vld [vmem:[%s3] sm:$0xff]
    %58 = vst [vmem:[#allocation1] ss:$2 sm:$0xff] %v49
    %s59 = scalar_lea.vmem [#allocation1], 16
    %60 = vst [vmem:[%s59] ss:$2 sm:$0xff] %v50
    %v61 = vld.sshfl [vmem:[#allocation1] sm:$0xff pattern:$0x75316420]
    %v62 = vld.sshfl [vmem:[#allocation1 + $0x8] sm:$0xff pattern:$0x75316420]
    %v63 = vld.sshfl [vmem:[#allocation1 + $0x10] sm:$0xff pattern:$0x75316420]
    %64 = vrot.lane.b32.xlu0 %v61, 1
    %v65 = vpop.permute.xlu0 %64
    %66 = vrot.lane.b32.xlu0 %v62, 1
    %v67 = vpop.permute.xlu0 %66
    %68 = vrot.lane.b32.xlu0 %v63, 1
    %v69 = vpop.permute.xlu0 %68
    %vm70 = vcmask 7168
    %v71 = vsel %vm70, %v65, %v67
    %v72 = vsel %vm70, %v67, %v69
    %v77 = vsel %vm70, 0.0, %v65
    %v78 = vsel %vm70, %v69, 0.0
    %v81 = vrot.slane %v77, 4
    %v82 = vrot.slane %v71, 4
    %v83 = vrot.slane %v72, 4
    %v84 = vrot.slane %v78, 4
    %85 = vrot.lane.b32.xlu0 %v81, 127
    %v86 = vpop.permute.xlu0 %85
    %87 = vrot.lane.b32.xlu0 %v82, 127
    %v88 = vpop.permute.xlu0 %87
    %89 = vrot.lane.b32.xlu0 %v83, 127
    %v90 = vpop.permute.xlu0 %89
    %91 = vrot.lane.b32.xlu0 %v84, 127
    %v92 = vpop.permute.xlu0 %91
    %vm93 = vcmask 1039360
    %v94 = vsel %vm93, %v86, %v88
    %v95 = vsel %vm93, %v88, %v90
    %v96 = vsel %vm93, %v90, %v92
    %100 = vrot.lane.b32.xlu0 %v77, 126
    %v101 = vpop.permute.xlu0 %100
    %102 = vrot.lane.b32.xlu0 %v71, 126
    %v103 = vpop.permute.xlu0 %102
    %104 = vrot.lane.b32.xlu0 %v72, 126
    %v105 = vpop.permute.xlu0 %104
    %106 = vrot.lane.b32.xlu0 %v78, 126
    %v107 = vpop.permute.xlu0 %106
    %vm108 = vcmask 1031168
    %v109 = vsel %vm108, %v101, %v103
    %v110 = vsel %vm108, %v103, %v105
    %v111 = vsel %vm108, %v105, %v107
    %vm112 = vcmask 1043456
    %v113 = vsel %vm112, %v77, %v94
    %v114 = vsel %vm112, %v71, %v95
    %v115 = vsel %vm112, %v72, %v96
    %117 = vset.pattern.permute.xlu0 0
    %118 = vperm.xlu0 %117, %v55
    %v119 = vpop.permute.xlu0 %118
    %vm121 = vcmask 97280
    %v123 = vsel %vm121, %v54, 0
    %v125 = vsel %vm112, %v109, 0
    %v127 = vsel %vm112, %v110, 0
    %v129 = vsel %vm112, %v111, 0
    %131 = vmatpush.msra.mxu0 0.0
    %132 = vmatpush.msra.mxu0 0.0
    %133 = vmatpush.msra.mxu0 0.0
    %134 = vmatpush.msra.mxu0 0.0
    %135 = vmatpush.msra.mxu0 0.0
    %136 = vmatpush.msra.mxu0 0.0
    %137 = vmatpush.msra.mxu0 0.0
    %138 = vmatpush.msra.mxu0 0.0
    %139 = vmatpush.msra.mxu0 0.0
    %140 = vmatpush.msra.mxu0 0.0
    %141 = vmatpush.msra.mxu0 0.0
    %142 = vmatpush.msra.mxu0 0.0
    %143 = vmatpush.msra.mxu0 0.0
    %144 = vmatpush.msra.mxu0 0.0
    %145 = vmatpush.msra.mxu0 %v125
    %146 = vmatpush.msra.mxu0 %v113
    %147 = vmatmul.f32.gmra.mxu0 %v123
    %v148 = vpop.f32.mrf.mxu0
    %v149 = vadd.f32 %v119, %v148
    %150 = vdwg.mxu0
    %151 = vmatpush.msra.mxu0 0.0
    %152 = vmatpush.msra.mxu0 0.0
    %153 = vmatpush.msra.mxu0 0.0
    %154 = vmatpush.msra.mxu0 0.0
    %155 = vmatpush.msra.mxu0 0.0
    %156 = vmatpush.msra.mxu0 0.0
    %157 = vmatpush.msra.mxu0 0.0
    %158 = vmatpush.msra.mxu0 0.0
    %159 = vmatpush.msra.mxu0 0.0
    %160 = vmatpush.msra.mxu0 0.0
    %161 = vmatpush.msra.mxu0 0.0
    %162 = vmatpush.msra.mxu0 0.0
    %163 = vmatpush.msra.mxu0 0.0
    %164 = vmatpush.msra.mxu0 0.0
    %165 = vmatpush.msra.mxu0 %v127
    %166 = vmatpush.msra.mxu0 %v114
    %167 = vmatmul.f32.gmra.mxu0 %v123
    %v168 = vpop.f32.mrf.mxu0
    %v169 = vadd.f32 %v119, %v168
    %170 = vdwg.mxu0
    %171 = vmatpush.msra.mxu0 0.0
    %172 = vmatpush.msra.mxu0 0.0
    %173 = vmatpush.msra.mxu0 0.0
    %174 = vmatpush.msra.mxu0 0.0
    %175 = vmatpush.msra.mxu0 0.0
    %176 = vmatpush.msra.mxu0 0.0
    %177 = vmatpush.msra.mxu0 0.0
    %178 = vmatpush.msra.mxu0 0.0
    %179 = vmatpush.msra.mxu0 0.0
    %180 = vmatpush.msra.mxu0 0.0
    %181 = vmatpush.msra.mxu0 0.0
    %182 = vmatpush.msra.mxu0 0.0
    %183 = vmatpush.msra.mxu0 0.0
    %184 = vmatpush.msra.mxu0 0.0
    %185 = vmatpush.msra.mxu0 %v129
    %186 = vmatpush.msra.mxu0 %v115
    %187 = vmatmul.f32.gmra.mxu0 %v123
    %v188 = vpop.f32.mrf.mxu0
    %v189 = vadd.f32 %v119, %v188
    %190 = vdwg.mxu0
    %v192 = vperm.slane %v51, 0
    %v193 = vperm.slane %v51, 1
    %v194 = vperm.slane %v51, 2
    %v198 = vmul.f32 %v149, %v192
    %v199 = vmul.f32 %v169, %v193
    %v200 = vmul.f32 %v189, %v194
    %v201 = vadd.f32 %v198, %v199
    %v202 = vadd.f32 %v201, %v200
    %203 = vadd.xlane.f32.xlu0 %v202
    %v204 = vpop.xlane.xlu0 %203
    %v205 = vmul.f32 %v204, 0.00390625
    %v206 = vsub.f32 %v149, %v205
    %v207 = vsub.f32 %v169, %v205
    %v208 = vsub.f32 %v189, %v205
    %v209 = vmul.f32 %v206, %v192
    %v210 = vmul.f32 %v207, %v193
    %v211 = vmul.f32 %v208, %v194
    %v212 = vmul.f32 %v209, %v209
    %v213 = vmul.f32 %v210, %v210
    %v214 = vmul.f32 %v211, %v211
    %v215 = vadd.f32 %v212, %v213
    %v216 = vadd.f32 %v215, %v214
    %217 = vadd.xlane.f32.xlu0 %v216
    %v218 = vpop.xlane.xlu0 %217
    %v219 = vmul.f32 %v218, 0.00390625
    %v220 = vadd.f32 %v219, 1e-05
    %v221 = vrsqrt.pop %v220
    %v222 = vmul.f32 %v221, %v220
    %v223 = vmul.f32 %v222, %v221
    %v224 = vmul.f32 0.5, %v223
    %v225 = vsub.f32 1.5, %v224
    %v226 = vmul.f32 %v221, %v225
    %vm227 = vweird.f32 %v220
    %vm228 = vweird.f32 %v221
    %vm229 = vmor %vm227, %vm228
    %v230 = vsel %vm229, %v221, %v226
    %v231 = vmul.f32 %v206, %v230
    %v232 = vmul.f32 %v207, %v230
    %v233 = vmul.f32 %v208, %v230
    %235 = vset.pattern.permute.xlu0 0
    %236 = vperm.xlu0 %235, %v52
    %v237 = vpop.permute.xlu0 %236
    %v239 = vmul.f32 %v231, %v237
    %v240 = vmul.f32 %v232, %v237
    %v241 = vmul.f32 %v233, %v237
    %243 = vset.pattern.permute.xlu0 0
    %244 = vperm.xlu0 %243, %v53
    %v245 = vpop.permute.xlu0 %244
    %v247 = vadd.f32 %v239, %v245
    %v248 = vadd.f32 %v240, %v245
    %v249 = vadd.f32 %v241, %v245
    %vm250 = vcmp.ge.f32.partialorder %v247, 0.0
    %vm251 = vcmp.ge.f32.partialorder %v248, 0.0
    %vm252 = vcmp.ge.f32.partialorder %v249, 0.0
    %v253 = vmul.f32 %v247, 0.2
    %v254 = vmul.f32 %v248, 0.2
    %v255 = vmul.f32 %v249, 0.2
    %v256 = vsel %vm250, %v247, %v253
    %v257 = vsel %vm251, %v248, %v254
    %v258 = vsel %vm252, %v249, %v255
    %v259 = vmul.f32 %v256, %v192
    %v260 = vmul.f32 %v257, %v193
    %v261 = vmul.f32 %v258, %v194
    %v262 = vld [vmem:[%s4] sm:$0xff]
    %v263 = vld [vmem:[%s5] sm:$0xff]
    %267 = vrot.lane.b32.xlu0 %v259, 1
    %v268 = vpop.permute.xlu0 %267
    %269 = vrot.lane.b32.xlu0 %v260, 1
    %v270 = vpop.permute.xlu0 %269
    %271 = vrot.lane.b32.xlu0 %v261, 1
    %v272 = vpop.permute.xlu0 %271
    %v273 = vsel %vm70, %v268, %v270
    %v274 = vsel %vm70, %v270, %v272
    %v279 = vsel %vm70, 0.0, %v268
    %v280 = vsel %vm70, %v272, 0.0
    %283 = vrot.lane.b32.xlu0 %v279, 127
    %v284 = vpop.permute.xlu0 %283
    %285 = vrot.lane.b32.xlu0 %v273, 127
    %v286 = vpop.permute.xlu0 %285
    %287 = vrot.lane.b32.xlu0 %v274, 127
    %v288 = vpop.permute.xlu0 %287
    %289 = vrot.lane.b32.xlu0 %v280, 127
    %v290 = vpop.permute.xlu0 %289
    %v291 = vsel %vm93, %v284, %v286
    %v292 = vsel %vm93, %v286, %v288
    %v293 = vsel %vm93, %v288, %v290
    %297 = vrot.lane.b32.xlu0 %v279, 126
    %v298 = vpop.permute.xlu0 %297
    %299 = vrot.lane.b32.xlu0 %v273, 126
    %v300 = vpop.permute.xlu0 %299
    %301 = vrot.lane.b32.xlu0 %v274, 126
    %v302 = vpop.permute.xlu0 %301
    %303 = vrot.lane.b32.xlu0 %v280, 126
    %v304 = vpop.permute.xlu0 %303
    %v305 = vsel %vm108, %v298, %v300
    %v306 = vsel %vm108, %v300, %v302
    %v307 = vsel %vm108, %v302, %v304
    %312 = vset.pattern.permute.xlu0 0
    %313 = vperm.xlu0 %312, %v263
    %v314 = vpop.permute.xlu0 %313
    %vm316 = vcmask 195584
    %v318 = vsel %vm316, %v262, 0
    %320 = vmatpush.msra.mxu0 0.0
    %321 = vmatpush.msra.mxu0 0.0
    %322 = vmatpush.msra.mxu0 0.0
    %323 = vmatpush.msra.mxu0 0.0
    %324 = vmatpush.msra.mxu0 0.0
    %325 = vmatpush.msra.mxu0 0.0
    %326 = vmatpush.msra.mxu0 0.0
    %327 = vmatpush.msra.mxu0 0.0
    %328 = vmatpush.msra.mxu0 0.0
    %329 = vmatpush.msra.mxu0 0.0
    %330 = vmatpush.msra.mxu0 0.0
    %331 = vmatpush.msra.mxu0 0.0
    %332 = vmatpush.msra.mxu0 0.0
    %333 = vmatpush.msra.mxu0 %v305
    %334 = vmatpush.msra.mxu0 %v291
    %335 = vmatpush.msra.mxu0 %v279
    %336 = vmatmul.f32.gmra.mxu0 %v318
    %v337 = vpop.f32.mrf.mxu0
    %v338 = vadd.f32 %v314, %v337
    %339 = vdwg.mxu0
    %340 = vmatpush.msra.mxu0 0.0
    %341 = vmatpush.msra.mxu0 0.0
    %342 = vmatpush.msra.mxu0 0.0
    %343 = vmatpush.msra.mxu0 0.0
    %344 = vmatpush.msra.mxu0 0.0
    %345 = vmatpush.msra.mxu0 0.0
    %346 = vmatpush.msra.mxu0 0.0
    %347 = vmatpush.msra.mxu0 0.0
    %348 = vmatpush.msra.mxu0 0.0
    %349 = vmatpush.msra.mxu0 0.0
    %350 = vmatpush.msra.mxu0 0.0
    %351 = vmatpush.msra.mxu0 0.0
    %352 = vmatpush.msra.mxu0 0.0
    %353 = vmatpush.msra.mxu0 %v306
    %354 = vmatpush.msra.mxu0 %v292
    %355 = vmatpush.msra.mxu0 %v273
    %356 = vmatmul.f32.gmra.mxu0 %v318
    %v357 = vpop.f32.mrf.mxu0
    %v358 = vadd.f32 %v314, %v357
    %359 = vdwg.mxu0
    %360 = vmatpush.msra.mxu0 0.0
    %361 = vmatpush.msra.mxu0 0.0
    %362 = vmatpush.msra.mxu0 0.0
    %363 = vmatpush.msra.mxu0 0.0
    %364 = vmatpush.msra.mxu0 0.0
    %365 = vmatpush.msra.mxu0 0.0
    %366 = vmatpush.msra.mxu0 0.0
    %367 = vmatpush.msra.mxu0 0.0
    %368 = vmatpush.msra.mxu0 0.0
    %369 = vmatpush.msra.mxu0 0.0
    %370 = vmatpush.msra.mxu0 0.0
    %371 = vmatpush.msra.mxu0 0.0
    %372 = vmatpush.msra.mxu0 0.0
    %373 = vmatpush.msra.mxu0 %v307
    %374 = vmatpush.msra.mxu0 %v293
    %375 = vmatpush.msra.mxu0 %v274
    %376 = vmatmul.f32.gmra.mxu0 %v318
    %v377 = vpop.f32.mrf.mxu0
    %v378 = vadd.f32 %v314, %v377
    %379 = vdwg.mxu0
    %v380 = vmul.f32 %v338, %v192
    %v381 = vmul.f32 %v358, %v193
    %v382 = vmul.f32 %v378, %v194
    %v383 = vadd.f32 %v380, %v381
    %v384 = vadd.f32 %v383, %v382
    %385 = vadd.xlane.f32.xlu0 %v384
    %v386 = vpop.xlane.xlu0 %385
    %v387 = vmul.f32 %v386, 0.00390625
    %v388 = vsub.f32 %v338, %v387
    %v389 = vsub.f32 %v358, %v387
    %v390 = vsub.f32 %v378, %v387
    %v391 = vmul.f32 %v388, %v192
    %v392 = vmul.f32 %v389, %v193
    %v393 = vmul.f32 %v390, %v194
    %v394 = vmul.f32 %v391, %v391
    %v395 = vmul.f32 %v392, %v392
    %v396 = vmul.f32 %v393, %v393
    %v397 = vadd.f32 %v394, %v395
    %v398 = vadd.f32 %v397, %v396
    %399 = vadd.xlane.f32.xlu0 %v398
    %v400 = vpop.xlane.xlu0 %399
    %v401 = vmul.f32 %v400, 0.00390625
    %v402 = vadd.f32 %v401, 1e-05
    %v403 = vrsqrt.pop %v402
    %v404 = vmul.f32 %v403, %v402
    %v405 = vmul.f32 %v404, %v403
    %v406 = vmul.f32 0.5, %v405
    %v407 = vsub.f32 1.5, %v406
    %v408 = vmul.f32 %v403, %v407
    %vm409 = vweird.f32 %v402
    %vm410 = vweird.f32 %v403
    %vm411 = vmor %vm409, %vm410
    %v412 = vsel %vm411, %v403, %v408
    %v413 = vmul.f32 %v388, %v412
    %v414 = vmul.f32 %v389, %v412
    %v415 = vmul.f32 %v390, %v412
    %v416 = vmul.f32 %v413, %v237
    %v417 = vmul.f32 %v414, %v237
    %v418 = vmul.f32 %v415, %v237
    %v419 = vadd.f32 %v416, %v245
    %v420 = vadd.f32 %v417, %v245
    %v421 = vadd.f32 %v418, %v245
    %vm422 = vcmp.ge.f32.partialorder %v419, 0.0
    %vm423 = vcmp.ge.f32.partialorder %v420, 0.0
    %vm424 = vcmp.ge.f32.partialorder %v421, 0.0
    %v425 = vmul.f32 %v419, 0.2
    %v426 = vmul.f32 %v420, 0.2
    %v427 = vmul.f32 %v421, 0.2
    %v428 = vsel %vm422, %v419, %v425
    %v429 = vsel %vm423, %v420, %v426
    %v430 = vsel %vm424, %v421, %v427
    %434 = vrot.lane.b32.xlu0 %v428, 127
    %v435 = vpop.permute.xlu0 %434
    %436 = vrot.lane.b32.xlu0 %v429, 127
    %v437 = vpop.permute.xlu0 %436
    %438 = vrot.lane.b32.xlu0 %v430, 127
    %v439 = vpop.permute.xlu0 %438
    %v440 = vsel %vm93, %v435, %v437
    %v441 = vsel %vm93, %v437, %v439
    %v445 = vsel %vm93, %v439, 0.0
    %v446 = vmax.f32 %v428, %v440
    %v447 = vmax.f32 %v429, %v441
    %v448 = vmax.f32 %v430, %v445
    %v449 = vld [vmem:[#allocation2] sm:$0xff]
    %v450 = vld [vmem:[#allocation2 + $0x8] sm:$0xff]
    %v451 = vld [vmem:[#allocation2 + $0x10] sm:$0xff]
    %v452 = vld [vmem:[#allocation2 + $0x18] sm:$0xff]
    %v453 = vld [vmem:[#allocation2 + $0x20] sm:$0xff]
    %v454 = vld [vmem:[#allocation2 + $0x28] sm:$0xff]
    %v455 = vld [vmem:[#allocation2 + $0x30] sm:$0xff]
    %v456 = vld [vmem:[#allocation2 + $0x38] sm:$0xff]
    %v457 = vld [vmem:[#allocation2 + $0x40] sm:$0xff]
    %v458 = vld [vmem:[#allocation2 + $0x48] sm:$0xff]
    %v459 = vld [vmem:[#allocation2 + $0x50] sm:$0xff]
    %v460 = vld [vmem:[#allocation2 + $0x58] sm:$0xff]
    %v461 = vld [vmem:[#allocation2 + $0x60] sm:$0xff]
    %v462 = vld [vmem:[#allocation2 + $0x68] sm:$0xff]
    %v463 = vld [vmem:[#allocation2 + $0x70] sm:$0xff]
    %v464 = vld [vmem:[#allocation2 + $0x78] sm:$0xff]
    %v465 = vld [vmem:[#allocation2 + $0x80] sm:$0xff]
    %v466 = vld [vmem:[#allocation2 + $0x88] sm:$0xff]
    %v467 = vld [vmem:[#allocation2 + $0x90] sm:$0xff]
    %v468 = vld [vmem:[#allocation2 + $0x98] sm:$0xff]
    %v469 = vld [vmem:[#allocation2 + $0xa0] sm:$0xff]
    %v470 = vld [vmem:[#allocation2 + $0xa8] sm:$0xff]
    %v471 = vld [vmem:[#allocation2 + $0xb0] sm:$0xff]
    %v472 = vld [vmem:[#allocation2 + $0xb8] sm:$0xff]
    %v473 = vld [vmem:[#allocation2 + $0xc0] sm:$0xff]
    %v474 = vld [vmem:[#allocation2 + $0xc8] sm:$0xff]
    %v475 = vld [vmem:[#allocation2 + $0xd0] sm:$0xff]
    %v476 = vld [vmem:[#allocation2 + $0xd8] sm:$0xff]
    %v477 = vld [vmem:[#allocation2 + $0xe0] sm:$0xff]
    %v478 = vld [vmem:[#allocation2 + $0xe8] sm:$0xff]
    %v479 = vld [vmem:[#allocation2 + $0xf0] sm:$0xff]
    %v480 = vld [vmem:[#allocation2 + $0xf8] sm:$0xff]
    %v481 = vld [vmem:[#allocation2 + $0x100] sm:$0xff]
    %v482 = vld [vmem:[#allocation2 + $0x108] sm:$0xff]
    %v483 = vld [vmem:[#allocation2 + $0x110] sm:$0xff]
    %v484 = vld [vmem:[#allocation2 + $0x118] sm:$0xff]
    %v485 = vld [vmem:[#allocation2 + $0x120] sm:$0xff]
    %v486 = vld [vmem:[#allocation2 + $0x128] sm:$0xff]
    %v487 = vld [vmem:[#allocation2 + $0x130] sm:$0xff]
    %v488 = vld [vmem:[#allocation2 + $0x138] sm:$0xff]
    %v489 = vld [vmem:[#allocation2 + $0x140] sm:$0xff]
    %v490 = vld [vmem:[#allocation2 + $0x148] sm:$0xff]
    %v491 = vld [vmem:[#allocation2 + $0x150] sm:$0xff]
    %v492 = vld [vmem:[#allocation2 + $0x158] sm:$0xff]
    %v493 = vld [vmem:[#allocation2 + $0x160] sm:$0xff]
    %v494 = vld [vmem:[#allocation2 + $0x168] sm:$0xff]
    %v495 = vld [vmem:[#allocation2 + $0x170] sm:$0xff]
    %v496 = vld [vmem:[#allocation2 + $0x178] sm:$0xff]
    %497 = vmatpush.msra.mxu0 %v464
    %498 = vmatpush.msra.mxu0 %v463
    %499 = vmatpush.msra.mxu0 %v462
    %500 = vmatpush.msra.mxu0 %v461
    %501 = vmatpush.msra.mxu0 %v460
    %502 = vmatpush.msra.mxu0 %v459
    %503 = vmatpush.msra.mxu0 %v458
    %504 = vmatpush.msra.mxu0 %v457
    %505 = vmatpush.msra.mxu0 %v456
    %506 = vmatpush.msra.mxu0 %v455
    %507 = vmatpush.msra.mxu0 %v454
    %508 = vmatpush.msra.mxu0 %v453
    %509 = vmatpush.msra.mxu0 %v452
    %510 = vmatpush.msra.mxu0 %v451
    %511 = vmatpush.msra.mxu0 %v450
    %512 = vmatpush.msra.mxu0 %v449
    %513 = vmatmul.f32.gmra.mxu0 %v446
    %v514 = vpop.f32.mrf.mxu0
    %v515 = vadd.f32 0.0, %v514
    %516 = vdwg.mxu0
    %517 = vmatpush.msra.mxu0 %v480
    %518 = vmatpush.msra.mxu0 %v479
    %519 = vmatpush.msra.mxu0 %v478
    %520 = vmatpush.msra.mxu0 %v477
    %521 = vmatpush.msra.mxu0 %v476
    %522 = vmatpush.msra.mxu0 %v475
    %523 = vmatpush.msra.mxu0 %v474
    %524 = vmatpush.msra.mxu0 %v473
    %525 = vmatpush.msra.mxu0 %v472
    %526 = vmatpush.msra.mxu0 %v471
    %527 = vmatpush.msra.mxu0 %v470
    %528 = vmatpush.msra.mxu0 %v469
    %529 = vmatpush.msra.mxu0 %v468
    %530 = vmatpush.msra.mxu0 %v467
    %531 = vmatpush.msra.mxu0 %v466
    %532 = vmatpush.msra.mxu0 %v465
    %533 = vmatmul.f32.gmra.mxu0 %v447
    %v534 = vpop.f32.mrf.mxu0
    %v535 = vadd.f32 %v515, %v534
    %536 = vdwg.mxu0
    %537 = vmatpush.msra.mxu0 %v496
    %538 = vmatpush.msra.mxu0 %v495
    %539 = vmatpush.msra.mxu0 %v494
    %540 = vmatpush.msra.mxu0 %v493
    %541 = vmatpush.msra.mxu0 %v492
    %542 = vmatpush.msra.mxu0 %v491
    %543 = vmatpush.msra.mxu0 %v490
    %544 = vmatpush.msra.mxu0 %v489
    %545 = vmatpush.msra.mxu0 %v488
    %546 = vmatpush.msra.mxu0 %v487
    %547 = vmatpush.msra.mxu0 %v486
    %548 = vmatpush.msra.mxu0 %v485
    %549 = vmatpush.msra.mxu0 %v484
    %550 = vmatpush.msra.mxu0 %v483
    %551 = vmatpush.msra.mxu0 %v482
    %552 = vmatpush.msra.mxu0 %v481
    %553 = vmatmul.f32.gmra.mxu0 %v448
    %v554 = vpop.f32.mrf.mxu0
    %v555 = vadd.f32 %v535, %v554
    %556 = vdwg.mxu0
    %557 = vst [vmem:[#allocation5] sm:$0xff] %v555
    // Predicated region
    $region42: #{tpu_custom_call.1} parent=1 // pred_check
      _
    $region43: #{tpu_custom_call.1} parent=1 // pred_check_branch
      %559 = sbr.rel (0) target = $region45
    $region44: #{tpu_custom_call.1} parent=1 // pred_region
      %561 = vsyncadd [#allocation4], 0
      %s563 = sshll.u32 [#allocation5], 4
      %s564 = int_to_ptr.vmem [resolvable:$true] %s563
      %s565 = sshll.u32 %s9, 4
      %s566 = int_to_ptr.hbm [resolvable:$true] %s565
      %568 = dma.vmem_to_hbm [thread:$0]  %s564, 128, %s566, [#allocation4]
    $region45: #{tpu_custom_call.1} parent=1 // pred_fallthru
      _
    // Predicated region
    $region46: #{tpu_custom_call.1} parent=1 // pred_check
      _
    $region47: #{tpu_custom_call.1} parent=1 // pred_check_branch
      %570 = sbr.rel (0) target = $region49
    $region48: #{tpu_custom_call.1} parent=1 // pred_region
      %572 = dma.done [#allocation4], 128
    $region49: #{tpu_custom_call.1} parent=1 // pred_fallthru
      _
    %573 = vsyncpa [#allocation3], 1
    %574 = vsyncpa [#allocation4], 1

</llo_original>
